<compile_context>
chip_gen: v5e
topology: v5e:2x2
jax: 0.10.0
libtpu: 0.0.40
codegen_flags: <defaults>
</compile_context>

<pallas_src>
import functools
from types import SimpleNamespace

import jax
import jax.numpy as jnp
from jax.experimental import pallas as pl
from jax.experimental.pallas import tpu as pltpu


# ----------------------------------------------------------------------------
# Pallas kernel: one (batch, row-tile) step of concat -> 3x3 conv -> ReLU
# ----------------------------------------------------------------------------
def _conv3x3_relu_kernel(img_ref, msk_ref, halo_ref, w_ref, b_ref, out_ref,
                         *, W, TH):
    # Layout: spatial (TH*W) on the 128-lane axis, channels on sublanes.
    #   img_ref  : (1, 3, L)            centre row-tile (image channels)
    #   msk_ref  : (1, 1, L)            centre row-tile (mask channel)
    #   halo_ref : (1, 1, 2, 4, W)      [row above, row below] x 4 channels
    #                                   (already zero at the image border)
    #   w_ref    : (Cout, 9*Cin), k = (kh*3 + kw)*Cin + ci
    #   b_ref    : (Cout, 1)
    #   out_ref  : (1, Cout, L)         lane-dense store
    L = TH * W
    f32 = jnp.float32

    # Channel concat (image ++ mask) happens in VMEM, not as an HBM pass.
    x_c = jnp.concatenate([img_ref[0], msk_ref[0]], axis=0)     # (4, L)
    halo = halo_ref[...]                                        # (1,1,2,4,W)
    top = halo[0, 0, 0]                                         # (4, W)
    bot = halo[0, 0, 1]                                         # (4, W)

    # Padded slab: [zero col | top halo row | centre rows | bottom halo | zero]
    zcol = jnp.zeros((x_c.shape[0], 1), f32)
    xpad = jnp.concatenate([zcol, top, x_c, bot, zcol], axis=-1)  # (4, L+2W+2)

    # Column-edge masks for the +-1 horizontal taps.
    col = jax.lax.broadcasted_iota(jnp.int32, (1, L), 1) % W
    m_left = (col >= 1).astype(f32)        # tap dw = -1 invalid at column 0
    m_right = (col <= W - 2).astype(f32)   # tap dw = +1 invalid at column W-1

    # im2col: nine statically-shifted views of the padded slab.
    taps = []
    for dh in (-1, 0, 1):
        for dw in (-1, 0, 1):
            s = (dh + 1) * W + dw + 1
            sl = xpad[:, s:s + L]                               # (4, L)
            if dw == -1:
                sl = sl * m_left
            elif dw == 1:
                sl = sl * m_right
            taps.append(sl)
    im2col = jnp.concatenate(taps, axis=0)                      # (9*Cin, L)

    # Single MXU pass; fused bias + ReLU; one lane-dense store.
    y = jnp.dot(w_ref[...], im2col, preferred_element_type=jnp.float32)
    y = jnp.maximum(y + b_ref[...], 0.0)
    out_ref[0] = y.astype(out_ref.dtype)


# ----------------------------------------------------------------------------
# Backbone ("baseline"): concat(image, mask) -> 3x3 conv -> ReLU
# ----------------------------------------------------------------------------
def _pick_tile_rows(H, W, max_lanes=16384):
    """Largest row tile that divides H, keeps TH*W a multiple of 128 and stays
    small enough to keep all VMEM intermediates (incl. the 9*Cin im2col slab)
    well inside the default scoped-VMEM limit on every chip."""
    best = H
    for th in range(1, H + 1):
        if H % th == 0 and (th * W) % 128 == 0 and th * W <= max_lanes:
            best = th
    return best


def _halo_rows(x, N, C, TH, nh, W):
    """For each row-tile t, gather the single row above / below it (zeros at
    the image border).  Tiny: (N, C, nh, W) each, ~2/TH of the input."""
    x5 = x.reshape(N, C, nh, TH, W)
    last = x5[:, :, :, TH - 1, :]                    # last row of each tile
    first = x5[:, :, :, 0, :]                        # first row of each tile
    zero = jnp.zeros((N, C, 1, W), x.dtype)
    top = jnp.concatenate([zero, last[:, :, :nh - 1, :]], axis=2)
    bot = jnp.concatenate([first[:, :, 1:, :], zero], axis=2)
    return top, bot                                  # each (N, C, nh, W)


def backbone_forward(params, composite_image, mask, tile_rows=None):
    # composite_image: (N, 3, H, W) f32 NCHW; mask: (N, 1, H, W) f32 NCHW
    w2d, b = params                                  # (Cout, 9*Cin), (Cout, 1)
    N, Ci, H, W = composite_image.shape
    assert Ci == 3 and mask.shape == (N, 1, H, W)
    C_all = Ci + 1
    Cout = w2d.shape[0]

    TH = _pick_tile_rows(H, W) if tile_rows is None else tile_rows
    assert H % TH == 0, "tile_rows must divide H"
    L = TH * W
    assert (L % 128 == 0) or (TH == H), "row tile must be lane-aligned or full"
    nh = H // TH

    # Free (metadata-only) reshapes: spatial goes on the 128-lane axis.
    img = composite_image.reshape(N, Ci, H * W).astype(jnp.float32)
    msk = mask.reshape(N, 1, H * W).astype(jnp.float32)

    # Tiny halo side-array: (N, nh, 2, 4, W), zero at the vertical image
    # border, so the kernel fetches exactly 1x input traffic (no full
    # neighbour-tile halo blocks) and needs no in-kernel border predication.
    img_top, img_bot = _halo_rows(img, N, Ci, TH, nh, W)
    msk_top, msk_bot = _halo_rows(msk, N, 1, TH, nh, W)
    top = jnp.concatenate([img_top, msk_top], axis=1)      # (N, 4, nh, W)
    bot = jnp.concatenate([img_bot, msk_bot], axis=1)      # (N, 4, nh, W)
    halo = jnp.stack([top, bot], axis=1)                   # (N, 2, 4, nh, W)
    halo = jnp.transpose(halo, (0, 3, 1, 2, 4))            # (N, nh, 2, 4, W)

    kern = functools.partial(_conv3x3_relu_kernel, W=W, TH=TH)

    c_map = lambda n, t: (n, 0, t)                          # centre tile

    out_flat = pl.pallas_call(
        kern,
        out_shape=jax.ShapeDtypeStruct((N, Cout, H * W), jnp.float32),
        grid_spec=pltpu.PrefetchScalarGridSpec(
            num_scalar_prefetch=0,
            grid=(N, nh),
            in_specs=[
                pl.BlockSpec((1, Ci, L), c_map),
                pl.BlockSpec((1, 1, L), c_map),
                pl.BlockSpec((1, 1, 2, C_all, W), lambda n, t: (n, t, 0, 0, 0)),
                pl.BlockSpec((Cout, w2d.shape[1]), lambda n, t: (0, 0)),
                pl.BlockSpec((Cout, 1), lambda n, t: (0, 0)),
            ],
            out_specs=pl.BlockSpec((1, Cout, L), c_map),
        ),
        compiler_params=pltpu.CompilerParams(
            dimension_semantics=("parallel", "parallel")),
    )(img, msk, halo, w2d, b)

    return out_flat.reshape(N, Cout, H, W)                  # free reshape


# ----------------------------------------------------------------------------
# build_model.forward equivalent
# ----------------------------------------------------------------------------
def build_model_forward(opt, params, composite_image, mask,
                        fg_INR_coordinates, start_proportion=None,
                        training=False):
    hr_branch = (opt.INRDecode and opt.hr_train and
                 (training or hasattr(opt, "split_num")
                  or hasattr(opt, "split_resolution")))
    # TODO(synk): in the real model the HR-train branch forwards cropped-region
    # coordinates (RSC strategy, Sec. 3.4) into the backbone; the baseline
    # stand-in has no coordinate-dependent path, so both branches reduce to the
    # same call and the coordinates are accepted but unused.
    del hr_branch, fg_INR_coordinates, start_proportion
    extracted_features = backbone_forward(
        params, composite_image, mask,
        tile_rows=getattr(opt, "tile_rows", None))
    if opt.INRDecode:
        return extracted_features
    return (None, None, extracted_features)


# ----------------------------------------------------------------------------
# Deterministic parameter init (synthetic backbone: Cin=4 -> Cout=8, 3x3 conv)
# ----------------------------------------------------------------------------
def init_params(key, cin=4, cout=8):
    kw_key, kb_key = jax.random.split(key)
    # Weights pre-packed as (Cout, 9*Cin): k = (kh*3 + kw)*Cin + ci,
    # channel order = [image(3), mask(1)].
    w2d = jax.random.normal(kw_key, (cout, 9 * cin), jnp.float32) * 0.1
    b = jax.random.normal(kb_key, (cout, 1), jnp.float32) * 0.01
    return w2d, b


if __name__ == "__main__":
    key = jax.random.PRNGKey(0)
    k_img, k_mask, k_coord, k_param = jax.random.split(key, 4)

    N, C, H, W = 2, 3, 16, 16
    composite_image = jax.random.normal(k_img, (N, C, H, W), jnp.float32)
    mask = (jax.random.uniform(k_mask, (N, 1, H, W)) > 0.5).astype(jnp.float32)
    fg_INR_coordinates = jax.random.uniform(k_coord, (N, H * W, 2), jnp.float32)

    params = init_params(k_param, cin=4, cout=8)
    opt = SimpleNamespace(INRDecode=False, hr_train=False)

    # Module-level forward (heuristic picks a single row tile at 16x16).
    _, _, feats = build_model_forward(
        opt, params, composite_image, mask, fg_INR_coordinates)
    feats = jax.block_until_ready(feats)

    # Also exercise the multi-tile halo path (two row tiles of 8 -> 128 lanes).
    feats_tiled = jax.block_until_ready(
        backbone_forward(params, composite_image, mask, tile_rows=8))

    # Reference: lax conv (NCHW / OIHW, SAME) on concat(image, mask).
    w2d, b = params
    x_ref = jnp.concatenate([composite_image, mask], axis=1)
    w_oihw = jnp.transpose(w2d.reshape(8, 3, 3, 4), (0, 3, 1, 2))
    ref = jax.lax.conv_general_dilated(
        x_ref, w_oihw, window_strides=(1, 1), padding="SAME",
        dimension_numbers=("NCHW", "OIHW", "NCHW"),
        precision=jax.lax.Precision.HIGHEST)
    ref = jnp.maximum(ref + b.reshape(1, 8, 1, 1), 0.0)

    assert feats.shape == (N, 8, H, W)
    assert jnp.allclose(feats, ref, atol=1e-4, rtol=1e-4)
    assert jnp.allclose(feats_tiled, ref, atol=1e-4, rtol=1e-4)

    print("KERNEL_OK")
</pallas_src>

<mosaic_0001>
module attributes {stable_mosaic.version = 11 : i64} {
  func.func @_conv3x3_relu_kernel(%arg0: i32, %arg1: i32, %arg2: memref<1x3x256xf32, #tpu.memory_space<vmem>>, %arg3: memref<1x1x256xf32, #tpu.memory_space<vmem>>, %arg4: memref<1x1x2x4x16xf32, #tpu.memory_space<vmem>>, %arg5: memref<8x36xf32, #tpu.memory_space<vmem>>, %arg6: memref<8x1xf32, #tpu.memory_space<vmem>>, %arg7: memref<1x8x256xf32, #tpu.memory_space<vmem>>) attributes {dimension_semantics = [#tpu.dimension_semantics<parallel>, #tpu.dimension_semantics<parallel>], iteration_bounds = array<i64: 2, 1>, scalar_prefetch = 0 : i64, scratch_operands = 0 : i64, tpu.core_type = #tpu.core_type<tc>, window_params = [{transform_indices = @transform_0, window_bounds = array<i64: 1, 3, 256>}, {transform_indices = @transform_1, window_bounds = array<i64: 1, 1, 256>}, {transform_indices = @transform_2, window_bounds = array<i64: 1, 1, 2, 4, 16>}, {pipeline_mode = #tpu.pipeline_mode<synchronous>, transform_indices = @transform_3, window_bounds = array<i64: 8, 36>}, {pipeline_mode = #tpu.pipeline_mode<synchronous>, transform_indices = @transform_4, window_bounds = array<i64: 8, 1>}, {transform_indices = @transform_5, window_bounds = array<i64: 1, 8, 256>}]} {
    %c0 = arith.constant 0 : index
    %c0_0 = arith.constant 0 : index
    %c0_1 = arith.constant 0 : index
    %0 = vector.load %arg2[%c0, %c0_0, %c0_1] : memref<1x3x256xf32, #tpu.memory_space<vmem>>, vector<1x3x256xf32>
    %1 = vector.shape_cast %0 : vector<1x3x256xf32> to vector<3x256xf32>
    %c0_2 = arith.constant 0 : index
    %c0_3 = arith.constant 0 : index
    %c0_4 = arith.constant 0 : index
    %2 = vector.load %arg3[%c0_2, %c0_3, %c0_4] : memref<1x1x256xf32, #tpu.memory_space<vmem>>, vector<1x1x256xf32>
    %3 = vector.shape_cast %2 : vector<1x1x256xf32> to vector<1x256xf32>
    %4 = tpu.concatenate %1, %3 in 0 : vector<3x256xf32>, vector<1x256xf32> -> vector<4x256xf32>
    %c0_5 = arith.constant 0 : index
    %c0_6 = arith.constant 0 : index
    %c0_7 = arith.constant 0 : index
    %c0_8 = arith.constant 0 : index
    %c0_9 = arith.constant 0 : index
    %5 = vector.load %arg4[%c0_5, %c0_6, %c0_7, %c0_8, %c0_9] : memref<1x1x2x4x16xf32, #tpu.memory_space<vmem>>, vector<1x1x2x4x16xf32>
    %6 = vector.extract_strided_slice %5 {offsets = [0, 0, 0, 0, 0], sizes = [1, 1, 1, 4, 16], strides = [1, 1, 1, 1, 1]} : vector<1x1x2x4x16xf32> to vector<1x1x1x4x16xf32>
    %7 = vector.shape_cast %6 : vector<1x1x1x4x16xf32> to vector<4x16xf32>
    %8 = vector.extract_strided_slice %5 {offsets = [0, 0, 1, 0, 0], sizes = [1, 1, 1, 4, 16], strides = [1, 1, 1, 1, 1]} : vector<1x1x2x4x16xf32> to vector<1x1x1x4x16xf32>
    %9 = vector.shape_cast %8 : vector<1x1x1x4x16xf32> to vector<4x16xf32>
    %cst = arith.constant 0.000000e+00 : f32
    %10 = vector.broadcast %cst : f32 to vector<4x1xf32>
    %11 = tpu.concatenate %10, %7, %4, %9, %10 in 1 : vector<4x1xf32>, vector<4x16xf32>, vector<4x256xf32>, vector<4x16xf32>, vector<4x1xf32> -> vector<4x290xf32>
    %12 = tpu.iota {dimensions = array<i32: 1>} : vector<1x256xi32>
    %c16_i32 = arith.constant 16 : i32
    %c0_i32 = arith.constant 0 : i32
    %13 = arith.cmpi eq, %c16_i32, %c0_i32 : i32
    %c1_i32 = arith.constant 1 : i32
    %14 = arith.select %13, %c1_i32, %c16_i32 : i32
    %15 = vector.broadcast %14 : i32 to vector<1x256xi32>
    %16 = arith.remsi %12, %15 : vector<1x256xi32>
    %c0_i32_10 = arith.constant 0 : i32
    %17 = vector.broadcast %c0_i32_10 : i32 to vector<1x256xi32>
    %18 = arith.cmpi ne, %16, %17 : vector<1x256xi32>
    %c0_i32_11 = arith.constant 0 : i32
    %19 = vector.broadcast %c0_i32_11 : i32 to vector<1x256xi32>
    %20 = arith.cmpi slt, %16, %19 : vector<1x256xi32>
    %c0_i32_12 = arith.constant 0 : i32
    %21 = arith.cmpi slt, %14, %c0_i32_12 : i32
    %22 = vector.broadcast %21 : i1 to vector<1x256xi1>
    %23 = vector.broadcast %22 : vector<1x256xi1> to vector<1x256xi1>
    %24 = arith.xori %20, %23 : vector<1x256xi1>
    %25 = arith.andi %24, %18 : vector<1x256xi1>
    %26 = vector.broadcast %14 : i32 to vector<1x256xi32>
    %27 = arith.addi %16, %26 : vector<1x256xi32>
    %28 = arith.select %25, %27, %16 : vector<1x256xi1>, vector<1x256xi32>
    %c1_i32_13 = arith.constant 1 : i32
    %29 = vector.broadcast %c1_i32_13 : i32 to vector<1x256xi32>
    %30 = arith.cmpi sge, %28, %29 : vector<1x256xi32>
    %31 = arith.extui %30 : vector<1x256xi1> to vector<1x256xi32>
    %32 = arith.sitofp %31 : vector<1x256xi32> to vector<1x256xf32>
    %c14_i32 = arith.constant 14 : i32
    %33 = vector.broadcast %c14_i32 : i32 to vector<1x256xi32>
    %34 = arith.cmpi sle, %28, %33 : vector<1x256xi32>
    %35 = arith.extui %34 : vector<1x256xi1> to vector<1x256xi32>
    %36 = arith.sitofp %35 : vector<1x256xi32> to vector<1x256xf32>
    %37 = vector.extract_strided_slice %11 {offsets = [0, 0], sizes = [4, 256], strides = [1, 1]} : vector<4x290xf32> to vector<4x256xf32>
    %38 = vector.broadcast %32 : vector<1x256xf32> to vector<4x256xf32>
    %39 = arith.mulf %37, %38 : vector<4x256xf32>
    %40 = vector.extract_strided_slice %11 {offsets = [0, 1], sizes = [4, 256], strides = [1, 1]} : vector<4x290xf32> to vector<4x256xf32>
    %41 = vector.extract_strided_slice %11 {offsets = [0, 2], sizes = [4, 256], strides = [1, 1]} : vector<4x290xf32> to vector<4x256xf32>
    %42 = vector.broadcast %36 : vector<1x256xf32> to vector<4x256xf32>
    %43 = arith.mulf %41, %42 : vector<4x256xf32>
    %44 = vector.extract_strided_slice %11 {offsets = [0, 16], sizes = [4, 256], strides = [1, 1]} : vector<4x290xf32> to vector<4x256xf32>
    %45 = vector.broadcast %32 : vector<1x256xf32> to vector<4x256xf32>
    %46 = arith.mulf %44, %45 : vector<4x256xf32>
    %47 = vector.extract_strided_slice %11 {offsets = [0, 17], sizes = [4, 256], strides = [1, 1]} : vector<4x290xf32> to vector<4x256xf32>
    %48 = vector.extract_strided_slice %11 {offsets = [0, 18], sizes = [4, 256], strides = [1, 1]} : vector<4x290xf32> to vector<4x256xf32>
    %49 = vector.broadcast %36 : vector<1x256xf32> to vector<4x256xf32>
    %50 = arith.mulf %48, %49 : vector<4x256xf32>
    %51 = vector.extract_strided_slice %11 {offsets = [0, 32], sizes = [4, 256], strides = [1, 1]} : vector<4x290xf32> to vector<4x256xf32>
    %52 = vector.broadcast %32 : vector<1x256xf32> to vector<4x256xf32>
    %53 = arith.mulf %51, %52 : vector<4x256xf32>
    %54 = vector.extract_strided_slice %11 {offsets = [0, 33], sizes = [4, 256], strides = [1, 1]} : vector<4x290xf32> to vector<4x256xf32>
    %55 = vector.extract_strided_slice %11 {offsets = [0, 34], sizes = [4, 256], strides = [1, 1]} : vector<4x290xf32> to vector<4x256xf32>
    %56 = vector.broadcast %36 : vector<1x256xf32> to vector<4x256xf32>
    %57 = arith.mulf %55, %56 : vector<4x256xf32>
    %58 = tpu.concatenate %39, %40, %43, %46, %47, %50, %53, %54, %57 in 0 : vector<4x256xf32>, vector<4x256xf32>, vector<4x256xf32>, vector<4x256xf32>, vector<4x256xf32>, vector<4x256xf32>, vector<4x256xf32>, vector<4x256xf32>, vector<4x256xf32> -> vector<36x256xf32>
    %c0_14 = arith.constant 0 : index
    %c0_15 = arith.constant 0 : index
    %59 = vector.load %arg5[%c0_14, %c0_15] : memref<8x36xf32, #tpu.memory_space<vmem>>, vector<8x36xf32>
    %cst_16 = arith.constant dense<0.000000e+00> : vector<8x256xf32>
    %60 = tpu.matmul %59, %58, %cst_16 {dimension_numbers = #tpu.dot_dimension_numbers<[1], [0], [0], [1], [0, 0, 1, 1], [], []>} : vector<8x36xf32>, vector<36x256xf32>, vector<8x256xf32> -> vector<8x256xf32>
    %c0_17 = arith.constant 0 : index
    %c0_18 = arith.constant 0 : index
    %61 = vector.load %arg6[%c0_17, %c0_18] : memref<8x1xf32, #tpu.memory_space<vmem>>, vector<8x1xf32>
    %62 = vector.broadcast %61 : vector<8x1xf32> to vector<8x256xf32>
    %63 = arith.addf %60, %62 : vector<8x256xf32>
    %cst_19 = arith.constant 0.000000e+00 : f32
    %64 = vector.broadcast %cst_19 : f32 to vector<8x256xf32>
    %65 = arith.maximumf %63, %64 : vector<8x256xf32>
    %c0_20 = arith.constant 0 : index
    %c0_21 = arith.constant 0 : index
    %c0_22 = arith.constant 0 : index
    %66 = vector.load %arg7[%c0_20, %c0_21, %c0_22] : memref<1x8x256xf32, #tpu.memory_space<vmem>>, vector<1x8x256xf32>
    %67 = vector.shape_cast %66 : vector<1x8x256xf32> to vector<8x256xf32>
    %68 = vector.shape_cast %65 : vector<8x256xf32> to vector<1x8x256xf32>
    tpu.vector_store %arg7[%c0_20, %c0_21, %c0_22], %68 {strides = array<i32>} : memref<1x8x256xf32, #tpu.memory_space<vmem>>, vector<1x8x256xf32>,
    return
  }
  func.func @transform_0(%arg0: i32, %arg1: i32) -> (i32, i32, i32) {
    %c0_i32 = arith.constant 0 : i32
    %c0_i32_0 = arith.constant 0 : i32
    return %arg0, %c0_i32, %arg1 : i32, i32, i32
  }
  func.func @transform_1(%arg0: i32, %arg1: i32) -> (i32, i32, i32) {
    %c0_i32 = arith.constant 0 : i32
    %c0_i32_0 = arith.constant 0 : i32
    return %arg0, %c0_i32, %arg1 : i32, i32, i32
  }
  func.func @transform_2(%arg0: i32, %arg1: i32) -> (i32, i32, i32, i32, i32) {
    %c0_i32 = arith.constant 0 : i32
    %c0_i32_0 = arith.constant 0 : i32
    %c0_i32_1 = arith.constant 0 : i32
    %c0_i32_2 = arith.constant 0 : i32
    return %arg0, %arg1, %c0_i32, %c0_i32_0, %c0_i32_1 : i32, i32, i32, i32, i32
  }
  func.func @transform_3(%arg0: i32, %arg1: i32) -> (i32, i32) {
    %c0_i32 = arith.constant 0 : i32
    %c0_i32_0 = arith.constant 0 : i32
    %c0_i32_1 = arith.constant 0 : i32
    return %c0_i32, %c0_i32_0 : i32, i32
  }
  func.func @transform_4(%arg0: i32, %arg1: i32) -> (i32, i32) {
    %c0_i32 = arith.constant 0 : i32
    %c0_i32_0 = arith.constant 0 : i32
    %c0_i32_1 = arith.constant 0 : i32
    return %c0_i32, %c0_i32_0 : i32, i32
  }
  func.func @transform_5(%arg0: i32, %arg1: i32) -> (i32, i32, i32) {
    %c0_i32 = arith.constant 0 : i32
    %c0_i32_0 = arith.constant 0 : i32
    return %arg0, %c0_i32, %arg1 : i32, i32, i32
  }
}

</mosaic_0001>

<llo_original>
// kernel: tpu_custom_call.1
$region0: #{tpu_custom_call.1}
  #allocation0 [shape = 'u32[]', space=smem, size = 0x4, offset = 0x4, fixed_abs, tag = 'smem constant byte address 0x4 - core index']
  #allocation1 [shape = 'u32[72,128]{1,0:T(1,128)}', space=vmem, size = 0x9000, scoped, tag = 'internal scratch']
  %s0 = inlined_call_operand.vmem [shape: f32[2,3,256], index: 0, kind: input, shape index: {}]
  %s1 = inlined_call_operand.vmem [shape: f32[2,1,256], index: 1, kind: input, shape index: {}]
  %s2 = inlined_call_operand.vmem [shape: f32[2,1,2,4,16], index: 2, kind: input, shape index: {}]
  %s3 = inlined_call_operand.vmem [shape: f32[8,36], index: 3, kind: input, shape index: {}]
  %s4 = inlined_call_operand.vmem [shape: f32[8,1], index: 4, kind: input, shape index: {}]
  %s5 = inlined_call_operand.hbm [shape: f32[2,8,256], index: 5, kind: output, shape index: {}]
  %s6 = sld [smem:[#allocation0]]
  $region53: #{tpu_custom_call.1} parent=0
    _
  %s8 = ssub.s32 1, %s6
  %s9 = scalar_select 0, %s8, %s6
  $region1: #{tpu_custom_call.1} parent=0
    #allocation2 [shape = 'u8[16384]{0}', space=vmem, size = 0x4000, scoped, tag = 'output window, operand 0']
    #allocation3 [shape = 's32[2]{0}', space=sflag, size = 0x8, scoped, tag = 'scoped memory for tpu_custom_call.1']
    %10 = vsyncpa [#allocation3], 0
    %s11 = scalar_lea.sflag [#allocation3], 1
    %12 = vsyncpa %s11, 0
    loop: start=0, step=1, limit=4
    $region2: #{tpu_custom_call.1} parent=1 // loop_pre_header
      _
    $region3: #{tpu_custom_call.1} parent=1 // loop_header
      %s14 = sphi 0, %s18
      %p15 = scmp.ge.s32.totalorder %s14, 4
      %s21 = sphi 0, %s33
      %s22 = sphi 0, %s29
      %s23 = sphi 0, %s21
      %s24 = sphi 0, %s22
      %s25 = sphi 0, %s23
      %s26 = sphi 0, %s24
      %s38 = sphi 0, %s40
      %s41 = sphi 0, %s38
      %s42 = sphi 0, %s41
      %s58 = sphi 0, %s42
      %s66 = sphi 0, %s68
      %s69 = sphi 0, %s66
      %s70 = sphi 0, %s69
      %s86 = sphi 0, %s70
      %s94 = sphi 0, %s96
      %s97 = sphi 0, %s94
      %s98 = sphi 0, %s97
      %s114 = sphi 0, %s98
      %s118 = sphi 0, %s118
      %s120 = sphi 0, %s118
      %s121 = sphi 0, %s120
      %s135 = sphi 0, %s121
      %s139 = sphi 0, %s139
      %s141 = sphi 0, %s139
      %s142 = sphi 0, %s141
      %s156 = sphi 0, %s142
      %s164 = sphi 0, %s166
      %s167 = sphi 0, %s164
      %s168 = sphi 0, %s167
      %s184 = sphi 0, %s168
    $region4: #{tpu_custom_call.1} parent=1 // loop_header_branch
      %17 = sbr.rel (%p15) target = $region8
    $region5: #{tpu_custom_call.1} parent=1 // loop_body
      %s19 = ssub.s32 %s14, 1
      %s20 = ssub.s32 %s14, 2
      %s27 = sadd.s32 1, %s22
      %p28 = scmp.ge.s32.totalorder %s27, 1
      %s29 = scalar_select %p28, 0, %s27
      %s30 = sadd.s32 1, %s21
      %s31 = scalar_select %p28, %s30, %s21
      %p32 = scmp.ge.s32.totalorder %s31, 2
      %s33 = scalar_select %p32, 0, %s31
      %s34 = ssub.s32 %s21, %s33
      %s35 = ssub.s32 %s22, %s29
      %s36 = sor.u32 %s34, %s35
      %p37 = scmp.eq.s32.totalorder %s36, 0
      %s39 = sadd.s32 %s38, 1
      %s40 = scalar_select %p37, %s38, %s39
      %p43 = pneg %p37
      %p44 = scmp.eq.s32.totalorder %s14, 1
      %p45 = por %p43, %p44
      %p46 = scmp.ne.s32.totalorder %s38, %s41
      %p47 = scmp.eq.s32.totalorder %s14, 0
      %p48 = por %p46, %p47
      %p49 = scmp.ne.s32.totalorder %s38, %s41
      %p50 = scmp.eq.s32.totalorder %s19, 1
      %p51 = por %p49, %p50
      %p52 = scmp.ne.s32.totalorder %s41, %s42
      %p53 = scmp.eq.s32.totalorder %s19, 0
      %p54 = por %p52, %p53
      %p55 = scmp.ne.s32.totalorder %s41, %s42
      %p56 = scmp.eq.s32.totalorder %s20, 1
      %p57 = por %p55, %p56
      %p59 = scmp.ne.s32.totalorder %s42, %s58
      %p60 = scmp.eq.s32.totalorder %s20, 0
      %p61 = por %p59, %p60
      %s62 = ssub.s32 %s21, %s33
      %s63 = ssub.s32 %s22, %s29
      %s64 = sor.u32 %s62, %s63
      %p65 = scmp.eq.s32.totalorder %s64, 0
      %s67 = sadd.s32 %s66, 1
      %s68 = scalar_select %p65, %s66, %s67
      %p71 = pneg %p65
      %p72 = scmp.eq.s32.totalorder %s14, 1
      %p73 = por %p71, %p72
      %p74 = scmp.ne.s32.totalorder %s66, %s69
      %p75 = scmp.eq.s32.totalorder %s14, 0
      %p76 = por %p74, %p75
      %p77 = scmp.ne.s32.totalorder %s66, %s69
      %p78 = scmp.eq.s32.totalorder %s19, 1
      %p79 = por %p77, %p78
      %p80 = scmp.ne.s32.totalorder %s69, %s70
      %p81 = scmp.eq.s32.totalorder %s19, 0
      %p82 = por %p80, %p81
      %p83 = scmp.ne.s32.totalorder %s69, %s70
      %p84 = scmp.eq.s32.totalorder %s20, 1
      %p85 = por %p83, %p84
      %p87 = scmp.ne.s32.totalorder %s70, %s86
      %p88 = scmp.eq.s32.totalorder %s20, 0
      %p89 = por %p87, %p88
      %s90 = ssub.s32 %s21, %s33
      %s91 = ssub.s32 %s22, %s29
      %s92 = sor.u32 %s90, %s91
      %p93 = scmp.eq.s32.totalorder %s92, 0
      %s95 = sadd.s32 %s94, 1
      %s96 = scalar_select %p93, %s94, %s95
      %p99 = pneg %p93
      %p100 = scmp.eq.s32.totalorder %s14, 1
      %p101 = por %p99, %p100
      %p102 = scmp.ne.s32.totalorder %s94, %s97
      %p103 = scmp.eq.s32.totalorder %s14, 0
      %p104 = por %p102, %p103
      %p105 = scmp.ne.s32.totalorder %s94, %s97
      %p106 = scmp.eq.s32.totalorder %s19, 1
      %p107 = por %p105, %p106
      %p108 = scmp.ne.s32.totalorder %s97, %s98
      %p109 = scmp.eq.s32.totalorder %s19, 0
      %p110 = por %p108, %p109
      %p111 = scmp.ne.s32.totalorder %s97, %s98
      %p112 = scmp.eq.s32.totalorder %s20, 1
      %p113 = por %p111, %p112
      %p115 = scmp.ne.s32.totalorder %s98, %s114
      %p116 = scmp.eq.s32.totalorder %s20, 0
      %p117 = por %p115, %p116
      %s119 = sadd.s32 %s118, 1
      %p122 = scmp.eq.s32.totalorder %s14, 1
      %p123 = scmp.ne.s32.totalorder %s118, %s120
      %p124 = scmp.eq.s32.totalorder %s14, 0
      %p125 = por %p123, %p124
      %p126 = scmp.ne.s32.totalorder %s118, %s120
      %p127 = scmp.eq.s32.totalorder %s19, 1
      %p128 = por %p126, %p127
      %p129 = scmp.ne.s32.totalorder %s120, %s121
      %p130 = scmp.eq.s32.totalorder %s19, 0
      %p131 = por %p129, %p130
      %p132 = scmp.ne.s32.totalorder %s120, %s121
      %p133 = scmp.eq.s32.totalorder %s20, 1
      %p134 = por %p132, %p133
      %p136 = scmp.ne.s32.totalorder %s121, %s135
      %p137 = scmp.eq.s32.totalorder %s20, 0
      %p138 = por %p136, %p137
      %s140 = sadd.s32 %s139, 1
      %p143 = scmp.eq.s32.totalorder %s14, 1
      %p144 = scmp.ne.s32.totalorder %s139, %s141
      %p145 = scmp.eq.s32.totalorder %s14, 0
      %p146 = por %p144, %p145
      %p147 = scmp.ne.s32.totalorder %s139, %s141
      %p148 = scmp.eq.s32.totalorder %s19, 1
      %p149 = por %p147, %p148
      %p150 = scmp.ne.s32.totalorder %s141, %s142
      %p151 = scmp.eq.s32.totalorder %s19, 0
      %p152 = por %p150, %p151
      %p153 = scmp.ne.s32.totalorder %s141, %s142
      %p154 = scmp.eq.s32.totalorder %s20, 1
      %p155 = por %p153, %p154
      %p157 = scmp.ne.s32.totalorder %s142, %s156
      %p158 = scmp.eq.s32.totalorder %s20, 0
      %p159 = por %p157, %p158
      %s160 = ssub.s32 %s21, %s33
      %s161 = ssub.s32 %s22, %s29
      %s162 = sor.u32 %s160, %s161
      %p163 = scmp.eq.s32.totalorder %s162, 0
      %s165 = sadd.s32 %s164, 1
      %s166 = scalar_select %p163, %s164, %s165
      %p169 = pneg %p163
      %p170 = scmp.eq.s32.totalorder %s14, 1
      %p171 = por %p169, %p170
      %p172 = scmp.ne.s32.totalorder %s164, %s167
      %p173 = scmp.eq.s32.totalorder %s14, 0
      %p174 = por %p172, %p173
      %p175 = scmp.ne.s32.totalorder %s164, %s167
      %p176 = scmp.eq.s32.totalorder %s19, 1
      %p177 = por %p175, %p176
      %p178 = scmp.ne.s32.totalorder %s167, %s168
      %p179 = scmp.eq.s32.totalorder %s19, 0
      %p180 = por %p178, %p179
      %p181 = scmp.ne.s32.totalorder %s167, %s168
      %p182 = scmp.eq.s32.totalorder %s20, 1
      %p183 = por %p181, %p182
      %p185 = scmp.ne.s32.totalorder %s168, %s184
      %p186 = scmp.eq.s32.totalorder %s20, 0
      %p187 = por %p185, %p186
      %p188 = scmp.le.s32.totalorder 1, %s14
      %p189 = scmp.lt.s32.totalorder %s14, 3
      %p190 = pnand %p188, %p189
      %p191 = pneg %p190
      // Predicated region
      $region9: #{tpu_custom_call.1} parent=5 // pred_check
        _
      $region10: #{tpu_custom_call.1} parent=5 // pred_check_branch
        %193 = sbr.rel (%p190) target = $region12
      $region11: #{tpu_custom_call.1} parent=5 // pred_region
        %s194 = ssub.s32 %s14, 1
        // Predicated region
        $region13: #{tpu_custom_call.1} parent=11 // pred_check
          %p195 = pneg %p131
        $region14: #{tpu_custom_call.1} parent=11 // pred_check_branch
          %197 = sbr.rel (%p195) target = $region16
        $region15: #{tpu_custom_call.1} parent=11 // pred_region
          _
        $region16: #{tpu_custom_call.1} parent=11 // pred_fallthru
          _
        // Predicated region
        $region17: #{tpu_custom_call.1} parent=11 // pred_check
          %p198 = pneg %p152
        $region18: #{tpu_custom_call.1} parent=11 // pred_check_branch
          %200 = sbr.rel (%p198) target = $region20
        $region19: #{tpu_custom_call.1} parent=11 // pred_region
          _
        $region20: #{tpu_custom_call.1} parent=11 // pred_fallthru
          _
      $region12: #{tpu_custom_call.1} parent=5 // pred_fallthru
        _
      %p201 = scmp.lt.s32.totalorder %s14, 2
      // Predicated region
      $region21: #{tpu_custom_call.1} parent=5 // pred_check
        %p202 = pneg %p201
      $region22: #{tpu_custom_call.1} parent=5 // pred_check_branch
        %204 = sbr.rel (%p202) target = $region24
      $region23: #{tpu_custom_call.1} parent=5 // pred_region
        // Predicated region
        $region25: #{tpu_custom_call.1} parent=23 // pred_check
          %p205 = pneg %p48
        $region26: #{tpu_custom_call.1} parent=23 // pred_check_branch
          %207 = sbr.rel (%p205) target = $region28
        $region27: #{tpu_custom_call.1} parent=23 // pred_region
          %s208 = smul.u32 2, %s22
          %p209 = scmp.lt.s32.totalorder %s21, 1
          %s210 = scalar_select %p209, %s21, 1
          %p211 = scmp.lt.s32.totalorder %s208, 1
          %s212 = scalar_select %p211, %s208, 1
          %s213 = smul.addr %s210, 2
          %s214 = sadd.s32 %s212, %s213
          %s215 = smul.addr %s214, 4
          %s216 = scalar_lea.vmem %s0, %s215
          %s217 = smul.u32 2, %s22
        $region28: #{tpu_custom_call.1} parent=23 // pred_fallthru
          _
        // Predicated region
        $region29: #{tpu_custom_call.1} parent=23 // pred_check
          %p218 = pneg %p76
        $region30: #{tpu_custom_call.1} parent=23 // pred_check_branch
          %220 = sbr.rel (%p218) target = $region32
        $region31: #{tpu_custom_call.1} parent=23 // pred_region
          %s221 = smul.u32 2, %s22
          %p222 = scmp.lt.s32.totalorder %s21, 1
          %s223 = scalar_select %p222, %s21, 1
          %p224 = scmp.lt.s32.totalorder %s221, 1
          %s225 = scalar_select %p224, %s221, 1
          %s226 = smul.addr %s223, 2
          %s227 = sadd.s32 %s225, %s226
          %s228 = scalar_lea.vmem %s1, %s227
          %s229 = smul.u32 2, %s22
        $region32: #{tpu_custom_call.1} parent=23 // pred_fallthru
          _
        // Predicated region
        $region33: #{tpu_custom_call.1} parent=23 // pred_check
          %p230 = pneg %p104
        $region34: #{tpu_custom_call.1} parent=23 // pred_check_branch
          %232 = sbr.rel (%p230) target = $region36
        $region35: #{tpu_custom_call.1} parent=23 // pred_region
          %p233 = scmp.lt.s32.totalorder %s21, 1
          %s234 = scalar_select %p233, %s21, 1
          %p235 = scmp.lt.s32.totalorder %s22, 0
          %s236 = scalar_select %p235, %s22, 0
          %s237 = smul.addr %s236, 2
          %s238 = smul.addr %s234, 2
          %s239 = sadd.s32 %s237, %s238
          %s240 = smul.addr %s239, 4
          %s241 = scalar_lea.vmem %s2, %s240
        $region36: #{tpu_custom_call.1} parent=23 // pred_fallthru
          _
      $region24: #{tpu_custom_call.1} parent=5 // pred_fallthru
        _
      %p242 = scmp.le.s32.totalorder 1, %s14
      %p243 = scmp.lt.s32.totalorder %s14, 3
      %p244 = pnand %p242, %p243
      %p245 = pneg %p244
      // Predicated region
      $region37: #{tpu_custom_call.1} parent=5 // pred_check
        _
      $region38: #{tpu_custom_call.1} parent=5 // pred_check_branch
        %247 = sbr.rel (%p244) target = $region40
      $region39: #{tpu_custom_call.1} parent=5 // pred_region
        %s248 = ssub.s32 %s14, 1
        %s249 = smul.u32 2, %s24
        %p250 = scmp.lt.s32.totalorder %s23, 1
        %s251 = scalar_select %p250, %s23, 1
        %p252 = scmp.lt.s32.totalorder %s249, 1
        %s253 = scalar_select %p252, %s249, 1
        %s254 = smul.addr %s251, 2
        %s255 = sadd.s32 %s253, %s254
        %s256 = smul.addr %s255, 4
        %s257 = scalar_lea.vmem %s0, %s256
        %p258 = pneg %p54
        %p259 = pneg %p51
        %s260 = smul.u32 2, %s24
        %p261 = scmp.lt.s32.totalorder %s23, 1
        %s262 = scalar_select %p261, %s23, 1
        %p263 = scmp.lt.s32.totalorder %s260, 1
        %s264 = scalar_select %p263, %s260, 1
        %s265 = smul.addr %s262, 2
        %s266 = sadd.s32 %s264, %s265
        %s267 = scalar_lea.vmem %s1, %s266
        %p268 = pneg %p82
        %p269 = pneg %p79
        %p270 = scmp.lt.s32.totalorder %s23, 1
        %s271 = scalar_select %p270, %s23, 1
        %p272 = scmp.lt.s32.totalorder %s24, 0
        %s273 = scalar_select %p272, %s24, 0
        %s274 = smul.addr %s273, 2
        %s275 = smul.addr %s271, 2
        %s276 = sadd.s32 %s274, %s275
        %s277 = smul.addr %s276, 4
        %s278 = scalar_lea.vmem %s2, %s277
        %p279 = pneg %p110
        %p280 = pneg %p107
        %p281 = pneg %p131
        %p282 = pneg %p128
        %p283 = pneg %p152
        %p284 = pneg %p149
        %p285 = pneg %p180
        %p286 = pneg %p177
        %s287 = sand.u32 %s167, 1
        %s288 = scalar_lea.sflag [#allocation3], %s287
        %s289 = sand.u32 %s167, 1
        %s290 = smul.addr %s289, 16
        %s291 = scalar_lea.vmem [#allocation2], %s290
        %s292 = smul.u32 2, %s24
        %p293 = scmp.lt.s32.totalorder %s23, 1
        %s294 = scalar_select %p293, %s23, 1
        %p295 = scmp.lt.s32.totalorder %s292, 1
        %s296 = scalar_select %p295, %s292, 1
        %s297 = smul.addr %s294, 2
        %s298 = sadd.s32 %s296, %s297
        %s299 = smul.addr %s298, 4
        %s300 = scalar_lea.vmem %s0, %s299
        %s301 = smul.u32 2, %s24
        %s302 = smul.u32 2, %s24
        %p303 = scmp.lt.s32.totalorder %s23, 1
        %s304 = scalar_select %p303, %s23, 1
        %p305 = scmp.lt.s32.totalorder %s302, 1
        %s306 = scalar_select %p305, %s302, 1
        %s307 = smul.addr %s304, 2
        %s308 = sadd.s32 %s306, %s307
        %s309 = scalar_lea.vmem %s1, %s308
        %s310 = smul.u32 2, %s24
        %p311 = scmp.lt.s32.totalorder %s23, 1
        %s312 = scalar_select %p311, %s23, 1
        %p313 = scmp.lt.s32.totalorder %s24, 0
        %s314 = scalar_select %p313, %s24, 0
        %s315 = smul.addr %s314, 2
        %s316 = smul.addr %s312, 2
        %s317 = sadd.s32 %s315, %s316
        %s318 = smul.addr %s317, 4
        %s319 = scalar_lea.vmem %s2, %s318
        %s320 = smul.u32 2, %s24
        %v321 = vld [vmem:[%s300] sm:$0x77]
        %v322 = vld [vmem:[%s309] sm:$0x3]
        %324 = vst [vmem:[#allocation1] ss:$2 sm:$0xff] %v321
        %v325 = vld.sshfl [vmem:[#allocation1] sm:$0xff pattern:$0x75316420]
        %v326 = vld.sshfl [vmem:[#allocation1 + $0x8] sm:$0xff pattern:$0x75316420]
        %v330 = vperm.slane %v322, 0
        %v331 = vperm.slane %v322, 1
        %vm334 = vcmask 1042432
        %v335 = vsel %vm334, %v325, %v330
        %v336 = vsel %vm334, %v326, %v331
        %v337 = vld [vmem:[%s319] sm:$0xf]
        %v338 = vld [vmem:[%s319 + $0x4] sm:$0xf]
        %340 = vrot.lane.b32.xlu0 %v337, 1
        %v341 = vpop.permute.xlu0 %340
        %345 = vrot.lane.b32.xlu0 %v335, 17
        %v346 = vpop.permute.xlu0 %345
        %347 = vrot.lane.b32.xlu0 %v336, 17
        %v348 = vpop.permute.xlu0 %347
        %vm349 = vcmask 138240
        %v350 = vsel %vm349, %v346, %v348
        %355 = vrot.lane.b32.xlu0 %v338, 17
        %v356 = vpop.permute.xlu0 %355
        %vm358 = vcmask 7168
        %v359 = vsel %vm358, 0.0, %v341
        %v360 = vsel %vm349, %v359, %v346
        %v361 = vsel %vm349, %v348, %v356
        %vm362 = vcmask 269312
        %v363 = vsel %vm362, %v361, 0.0
        %v364 = vlaneseq
        %v365 = vand.u32 %v364, 127
        %v366 = vadd.s32 %v365, 128
        %vm367 = vcmp.lt.s32.totalorder %v365, 0
        %v368 = vsub.s32 0, %v365
        %v369 = vsel %vm367, %v368, %v365
        %v370 = vshrl.u32 %v369, 4
        %v371 = vand.u32 %v369, 15
        %v372 = vsub.s32 0, %v371
        %v373 = vsel %vm367, %v372, %v371
        %vm374 = vcmp.lt.s32.totalorder %v366, 0
        %v375 = vsub.s32 0, %v366
        %v376 = vsel %vm374, %v375, %v366
        %v377 = vshrl.u32 %v376, 4
        %v378 = vand.u32 %v376, 15
        %v379 = vsub.s32 0, %v378
        %v380 = vsel %vm374, %v379, %v378
        %vm381 = vcmp.ne.s32.totalorder %v373, 0
        %vm382 = vcmp.ne.s32.totalorder %v380, 0
        %vm383 = vcmp.lt.s32.totalorder %v373, 0
        %vm384 = vcmp.lt.s32.totalorder %v380, 0
        %vm385 = vmand %vm383, %vm381
        %vm386 = vmand %vm384, %vm382
        %v387 = vadd.s32 %v373, 16
        %v388 = vadd.s32 %v380, 16
        %v389 = vsel %vm385, %v387, %v373
        %v390 = vsel %vm386, %v388, %v380
        %vm391 = vcmp.ge.s32.totalorder %v389, 1
        %vm392 = vcmp.ge.s32.totalorder %v390, 1
        %v393 = vsel %vm391, 1, 0
        %v394 = vsel %vm392, 1, 0
        %v395 = vcvt.s32.f32 %v393
        %v396 = vcvt.s32.f32 %v394
        %vm397 = vcmp.le.s32.totalorder %v389, 14
        %vm398 = vcmp.le.s32.totalorder %v390, 14
        %v399 = vsel %vm397, 1, 0
        %v400 = vsel %vm398, 1, 0
        %v401 = vcvt.s32.f32 %v399
        %v402 = vcvt.s32.f32 %v400
        %v403 = vmul.f32 %v360, %v395
        %v404 = vmul.f32 %v350, %v396
        %407 = vrot.lane.b32.xlu0 %v401, 2
        %v408 = vpop.permute.xlu0 %407
        %409 = vrot.lane.b32.xlu0 %v402, 2
        %v410 = vpop.permute.xlu0 %409
        %vm411 = vcmask 15360
        %v412 = vsel %vm411, %v408, %v410
        %v416 = vmul.f32 %v360, %v408
        %v417 = vmul.f32 %v350, %v412
        %v418 = vmul.f32 %v363, %v410
        %421 = vrot.lane.b32.xlu0 %v395, 16
        %v422 = vpop.permute.xlu0 %421
        %423 = vrot.lane.b32.xlu0 %v396, 16
        %v424 = vpop.permute.xlu0 %423
        %vm425 = vcmask 130048
        %v426 = vsel %vm425, %v422, %v424
        %v430 = vmul.f32 %v360, %v422
        %v431 = vmul.f32 %v350, %v426
        %v432 = vmul.f32 %v363, %v424
        %433 = vrot.lane.b32.xlu0 %v401, 18
        %v434 = vpop.permute.xlu0 %433
        %435 = vrot.lane.b32.xlu0 %v402, 18
        %v436 = vpop.permute.xlu0 %435
        %vm437 = vcmask 146432
        %v438 = vsel %vm437, %v434, %v436
        %v442 = vmul.f32 %v360, %v434
        %v443 = vmul.f32 %v350, %v438
        %v444 = vmul.f32 %v363, %v436
        %445 = vrot.lane.b32.xlu0 %v395, 32
        %v446 = vpop.permute.xlu0 %445
        %447 = vrot.lane.b32.xlu0 %v396, 32
        %v448 = vpop.permute.xlu0 %447
        %vm449 = vcmask 261120
        %v450 = vsel %vm449, %v446, %v448
        %v454 = vmul.f32 %v360, %v446
        %v455 = vmul.f32 %v350, %v450
        %v456 = vmul.f32 %v363, %v448
        %457 = vrot.lane.b32.xlu0 %v401, 34
        %v458 = vpop.permute.xlu0 %457
        %459 = vrot.lane.b32.xlu0 %v402, 34
        %v460 = vpop.permute.xlu0 %459
        %vm461 = vcmask 277504
        %v462 = vsel %vm461, %v458, %v460
        %v466 = vmul.f32 %v360, %v458
        %v467 = vmul.f32 %v350, %v462
        %v468 = vmul.f32 %v363, %v460
        %v471 = vrot.slane %v360, 4
        %v472 = vrot.slane %v350, 4
        %v473 = vrot.slane %v363, 4
        %474 = vrot.lane.b32.xlu0 %v471, 127
        %v475 = vpop.permute.xlu0 %474
        %476 = vrot.lane.b32.xlu0 %v472, 127
        %v477 = vpop.permute.xlu0 %476
        %478 = vrot.lane.b32.xlu0 %v473, 127
        %v479 = vpop.permute.xlu0 %478
        %vm480 = vcmask 1039360
        %v481 = vsel %vm480, %v475, %v477
        %v482 = vsel %vm480, %v477, %v479
        %488 = vrot.lane.b32.xlu0 %v416, 126
        %v489 = vpop.permute.xlu0 %488
        %490 = vrot.lane.b32.xlu0 %v417, 126
        %v491 = vpop.permute.xlu0 %490
        %492 = vrot.lane.b32.xlu0 %v418, 126
        %v493 = vpop.permute.xlu0 %492
        %vm494 = vcmask 1031168
        %v495 = vsel %vm494, %v489, %v491
        %v496 = vsel %vm494, %v491, %v493
        %v502 = vrot.slane %v430, 4
        %v503 = vrot.slane %v431, 4
        %v504 = vrot.slane %v432, 4
        %505 = vrot.lane.b32.xlu0 %v502, 112
        %v506 = vpop.permute.xlu0 %505
        %507 = vrot.lane.b32.xlu0 %v503, 112
        %v508 = vpop.permute.xlu0 %507
        %509 = vrot.lane.b32.xlu0 %v504, 112
        %v510 = vpop.permute.xlu0 %509
        %vm511 = vcmask 916480
        %v512 = vsel %vm511, %v506, %v508
        %v513 = vsel %vm511, %v508, %v510
        %516 = vrot.lane.b32.xlu0 %v360, 111
        %v517 = vpop.permute.xlu0 %516
        %518 = vrot.lane.b32.xlu0 %v350, 111
        %v519 = vpop.permute.xlu0 %518
        %520 = vrot.lane.b32.xlu0 %v363, 111
        %v521 = vpop.permute.xlu0 %520
        %vm522 = vcmask 908288
        %v523 = vsel %vm522, %v517, %v519
        %v524 = vsel %vm522, %v519, %v521
        %v530 = vrot.slane %v442, 4
        %v531 = vrot.slane %v443, 4
        %v532 = vrot.slane %v444, 4
        %533 = vrot.lane.b32.xlu0 %v530, 110
        %v534 = vpop.permute.xlu0 %533
        %535 = vrot.lane.b32.xlu0 %v531, 110
        %v536 = vpop.permute.xlu0 %535
        %537 = vrot.lane.b32.xlu0 %v532, 110
        %v538 = vpop.permute.xlu0 %537
        %vm539 = vcmask 900096
        %v540 = vsel %vm539, %v534, %v536
        %v541 = vsel %vm539, %v536, %v538
        %547 = vrot.lane.b32.xlu0 %v454, 96
        %v548 = vpop.permute.xlu0 %547
        %549 = vrot.lane.b32.xlu0 %v455, 96
        %v550 = vpop.permute.xlu0 %549
        %551 = vrot.lane.b32.xlu0 %v456, 96
        %v552 = vpop.permute.xlu0 %551
        %vm553 = vcmask 785408
        %v554 = vsel %vm553, %v548, %v550
        %v555 = vsel %vm553, %v550, %v552
        %558 = vrot.lane.b32.xlu0 %v471, 95
        %v559 = vpop.permute.xlu0 %558
        %560 = vrot.lane.b32.xlu0 %v472, 95
        %v561 = vpop.permute.xlu0 %560
        %562 = vrot.lane.b32.xlu0 %v473, 95
        %v563 = vpop.permute.xlu0 %562
        %vm564 = vcmask 777216
        %v565 = vsel %vm564, %v559, %v561
        %v566 = vsel %vm564, %v561, %v563
        %572 = vrot.lane.b32.xlu0 %v466, 94
        %v573 = vpop.permute.xlu0 %572
        %574 = vrot.lane.b32.xlu0 %v467, 94
        %v575 = vpop.permute.xlu0 %574
        %576 = vrot.lane.b32.xlu0 %v468, 94
        %v577 = vpop.permute.xlu0 %576
        %vm578 = vcmask 769024
        %v579 = vsel %vm578, %v573, %v575
        %v580 = vsel %vm578, %v575, %v577
        %vm581 = vcmask 1043456
        %v582 = vsel %vm581, %v403, %v481
        %v583 = vsel %vm581, %v404, %v482
        %v584 = vsel %vm581, %v495, %v512
        %v585 = vsel %vm581, %v496, %v513
        %v586 = vsel %vm581, %v523, %v540
        %v587 = vsel %vm581, %v524, %v541
        %v588 = vsel %vm581, %v554, %v565
        %v589 = vsel %vm581, %v555, %v566
        %v590 = vld [vmem:[%s3] sm:$0xff]
        %v591 = vld [vmem:[%s4] sm:$0xff]
        %593 = vset.pattern.permute.xlu0 0
        %594 = vperm.xlu0 %593, %v591
        %v595 = vpop.permute.xlu0 %594
        %vm597 = vcmask 293888
        %v599 = vsel %vm597, %v590, 0
        %v601 = vsel %vm581, %v579, 0
        %v603 = vsel %vm581, %v580, 0
        %605 = vmatpush.msra.mxu0 0.0
        %606 = vmatpush.msra.mxu0 0.0
        %607 = vmatpush.msra.mxu0 0.0
        %608 = vmatpush.msra.mxu0 0.0
        %609 = vmatpush.msra.mxu0 0.0
        %610 = vmatpush.msra.mxu0 0.0
        %611 = vmatpush.msra.mxu0 0.0
        %612 = vmatpush.msra.mxu0 0.0
        %613 = vmatpush.msra.mxu0 0.0
        %614 = vmatpush.msra.mxu0 0.0
        %615 = vmatpush.msra.mxu0 0.0
        %616 = vmatpush.msra.mxu0 %v601
        %617 = vmatpush.msra.mxu0 %v588
        %618 = vmatpush.msra.mxu0 %v586
        %619 = vmatpush.msra.mxu0 %v584
        %620 = vmatpush.msra.mxu0 %v582
        %621 = vmatmul.f32.gmra.mxu0 %v599
        %v622 = vpop.f32.mrf.mxu0
        %v623 = vadd.f32 %v595, %v622
        %624 = vdwg.mxu0
        %625 = vmatpush.msra.mxu0 0.0
        %626 = vmatpush.msra.mxu0 0.0
        %627 = vmatpush.msra.mxu0 0.0
        %628 = vmatpush.msra.mxu0 0.0
        %629 = vmatpush.msra.mxu0 0.0
        %630 = vmatpush.msra.mxu0 0.0
        %631 = vmatpush.msra.mxu0 0.0
        %632 = vmatpush.msra.mxu0 0.0
        %633 = vmatpush.msra.mxu0 0.0
        %634 = vmatpush.msra.mxu0 0.0
        %635 = vmatpush.msra.mxu0 0.0
        %636 = vmatpush.msra.mxu0 %v603
        %637 = vmatpush.msra.mxu0 %v589
        %638 = vmatpush.msra.mxu0 %v587
        %639 = vmatpush.msra.mxu0 %v585
        %640 = vmatpush.msra.mxu0 %v583
        %641 = vmatmul.f32.gmra.mxu0 %v599
        %v642 = vpop.f32.mrf.mxu0
        %v643 = vadd.f32 %v595, %v642
        %644 = vdwg.mxu0
        %v645 = vmax.f32 %v623, 0.0
        %v646 = vmax.f32 %v643, 0.0
        %647 = vst [vmem:[%s291] sm:$0xff] %v645
        %648 = vst [vmem:[%s291 + $0x8] sm:$0xff] %v646
        %s649 = sand.u32 %s167, 1
        %s650 = scalar_lea.sflag [#allocation3], %s649
        %s651 = sand.u32 %s167, 1
        %s652 = smul.addr %s651, 16
        %s653 = scalar_lea.vmem [#allocation2], %s652
        // Predicated region
        $region41: #{tpu_custom_call.1} parent=39 // pred_check
          %p654 = pneg %p177
        $region42: #{tpu_custom_call.1} parent=39 // pred_check_branch
          %656 = sbr.rel (%p654) target = $region44
        $region43: #{tpu_custom_call.1} parent=39 // pred_region
          %s657 = smul.u32 2, %s24
          %659 = vsyncadd %s650, 0
          %s660 = smul.addr %s23, 2
          %s661 = sadd.s32 %s657, %s660
          %s662 = smul.addr %s661, 8
          %s663 = scalar_lea.hbm %s5, %s662
          %s665 = sshll.u32 %s653, 4
          %s666 = int_to_ptr.vmem [resolvable:$true] %s665
          %s667 = sshll.u32 %s663, 4
          %s668 = int_to_ptr.hbm [resolvable:$true] %s667
          %670 = dma.vmem_to_hbm [thread:$0]  %s666, 256, %s668, %s650
        $region44: #{tpu_custom_call.1} parent=39 // pred_fallthru
          _
      $region40: #{tpu_custom_call.1} parent=5 // pred_fallthru
        _
      %p671 = scmp.le.s32.totalorder 2, %s14
      // Predicated region
      $region45: #{tpu_custom_call.1} parent=5 // pred_check
        %p672 = pneg %p671
      $region46: #{tpu_custom_call.1} parent=5 // pred_check_branch
        %674 = sbr.rel (%p672) target = $region48
      $region47: #{tpu_custom_call.1} parent=5 // pred_region
        %s675 = ssub.s32 %s14, 2
        // Predicated region
        $region49: #{tpu_custom_call.1} parent=47 // pred_check
          %p676 = pneg %p183
        $region50: #{tpu_custom_call.1} parent=47 // pred_check_branch
          %678 = sbr.rel (%p676) target = $region52
        $region51: #{tpu_custom_call.1} parent=47 // pred_region
          %s679 = sand.u32 %s168, 1
          %s680 = scalar_lea.sflag [#allocation3], %s679
          %s681 = sand.u32 %s168, 1
          %s682 = smul.addr %s681, 16
          %s683 = scalar_lea.vmem [#allocation2], %s682
          %685 = dma.done %s680, 256
        $region52: #{tpu_custom_call.1} parent=47 // pred_fallthru
          _
      $region48: #{tpu_custom_call.1} parent=5 // pred_fallthru
        _
    $region6: #{tpu_custom_call.1} parent=1 // loop_footer
      %s18 = sadd.s32 1, %s14
    $region7: #{tpu_custom_call.1} parent=1 // loop_footer_branch
      %13 = sbr.rel target = $region3
    $region8: #{tpu_custom_call.1} parent=1 // loop_exit
      _
    %686 = vsyncpa [#allocation3], 1
    %s687 = scalar_lea.sflag [#allocation3], 1
    %688 = vsyncpa %s687, 1

</llo_original>
